<compile_context>
chip_gen: v6e
topology: v6e:2x2x1
jax: 0.10.0
libtpu: 0.0.40
codegen_flags: <defaults>
</compile_context>

<pallas_src>
import functools

import jax
import jax.numpy as jnp
from jax import lax
from jax.experimental import pallas as pl
from jax.experimental.pallas import tpu as pltpu


# --------------------------------------------------------------------------
# Fused kernel: one (batch b, sequence-tile s) grid step.
# --------------------------------------------------------------------------
def _attn_kernel(q_ref, k_ref, v_ref, mask_ref,
                 wq_ref, wk_ref, bqk_ref, we_ref, be_ref,
                 ctx_ref, w_ref,
                 m_sc, l_sc, acc_sc, qp_sc):
    """Shapes seen by the kernel (ts = sequence tile, n_s = number of tiles):
      q_ref    (1, 1, Q)    query row for batch b
      k_ref    (1, ts, K)   key tile           (bf16/f32)
      v_ref    (1, ts, K)   value tile         (bf16/f32)
      mask_ref (1, n_s, ts) pad mask row for batch b (int32, resident)
      wq_ref (Q,H)  wk_ref (K,H)  bqk_ref (1,H)=bq+bk  we_ref (1,H)  be_ref (1,1)
      ctx_ref  (1, 1, K)    context output     (VMEM-resident across s)
      w_ref    (1, n_s, ts) attention weights  (VMEM-resident across s)
      scratch: m (1,1) running max, l (1,1) denom, acc (1,K) context numerator,
               qp (1,H) query projection (loop invariant).
    """
    s = pl.program_id(1)
    n_s = pl.num_programs(1)

    @pl.when(s == 0)
    def _init():
        m_sc[...] = jnp.full_like(m_sc, -jnp.inf)
        l_sc[...] = jnp.zeros_like(l_sc)
        acc_sc[...] = jnp.zeros_like(acc_sc)
        # Query projection is loop-invariant over the sequence: compute once.
        qp_sc[...] = (jnp.dot(q_ref[0], wq_ref[...],
                              preferred_element_type=jnp.float32)
                      + bqk_ref[...])

    # Key projection for this tile (MXU, f32 accumulation).
    kp = jnp.dot(k_ref[0], wk_ref[...], preferred_element_type=jnp.float32)  # (ts,H)

    # Additive combine + tanh (EUP).
    # TODO(synk): on v6e/v7x the tanh could run in bf16 (bf16 EUP); kept f32 for v5e.
    t = jnp.tanh(qp_sc[...] + kp)                                            # (ts,H)

    # Energy layer Linear(H,1) as an NT contraction -> lane-dense (1, ts).
    f = lax.dot_general(we_ref[...], t,
                        dimension_numbers=(((1,), (1,)), ((), ())),
                        preferred_element_type=jnp.float32) + be_ref[...]    # (1,ts)

    # Pad mask -> -inf (masked_fill_ semantics).
    mvec = mask_ref[0, pl.ds(s, 1), :]                                       # (1,ts)
    f = jnp.where(mvec > 0, -jnp.inf, f)

    # Stash raw masked logits into the VMEM-resident weights block; they are
    # normalized in place on the last sequence tile.
    w_ref[0, pl.ds(s, 1), :] = f

    # Online (flash-style) softmax update over the sequence axis.
    m_prev = m_sc[...]
    m_new = jnp.maximum(m_prev, jnp.max(f, axis=1, keepdims=True))           # (1,1)
    # Guards keep fully padded leading tiles from poisoning the running stats.
    alpha = jnp.where(m_prev == -jnp.inf, 0.0, jnp.exp(m_prev - m_new))      # (1,1)
    p = jnp.where(mvec > 0, 0.0, jnp.exp(f - m_new))                         # (1,ts)
    l_sc[...] = alpha * l_sc[...] + jnp.sum(p, axis=1, keepdims=True)
    acc_sc[...] = alpha * acc_sc[...] + jnp.dot(
        p, v_ref[0].astype(jnp.float32), preferred_element_type=jnp.float32)  # (1,K)
    m_sc[...] = m_new

    @pl.when(s == n_s - 1)
    def _finalize():
        # TODO(synk): a fully padded batch column gives l == 0 -> NaN weights,
        # matching PyTorch masked_fill + softmax; guard here if that can occur.
        inv_l = 1.0 / l_sc[...]                                              # (1,1)
        f_all = w_ref[0]                                                     # (n_s,ts)
        w_ref[0] = jnp.exp(f_all - m_sc[...]) * inv_l
        ctx_ref[0] = acc_sc[...] * inv_l


# --------------------------------------------------------------------------
# Wrapper
# --------------------------------------------------------------------------
def _choose_seq_tile(seq_len, key_size, itemsize, budget_bytes=4 * 1024 * 1024):
    """Largest multiple-of-8 divisor of seq_len whose double-buffered key+value
    tiles fit a conservative (v7x-safe) VMEM budget."""
    cands = [d for d in range(8, seq_len + 1, 8) if seq_len % d == 0]
    if not cands:
        # TODO(synk): pad ragged sequence lengths to a multiple of 8 instead.
        return seq_len
    tile_bytes = lambda d: 2 * 2 * d * key_size * itemsize  # key+value, double-buffered
    fitting = [d for d in cands if tile_bytes(d) <= budget_bytes]
    return max(fitting) if fitting else min(cands)


def init_params(key, query_size, key_size, hidden_dim):
    ks = jax.random.split(key, 6)
    sq = 1.0 / jnp.sqrt(query_size)
    sk = 1.0 / jnp.sqrt(key_size)
    sh = 1.0 / jnp.sqrt(hidden_dim)
    return dict(
        # Linear weights stored transposed for right-multiplication (x @ W_t).
        wq_t=jax.random.uniform(ks[0], (query_size, hidden_dim), jnp.float32, -sq, sq),
        bq=jax.random.uniform(ks[1], (1, hidden_dim), jnp.float32, -sq, sq),
        wk_t=jax.random.uniform(ks[2], (key_size, hidden_dim), jnp.float32, -sk, sk),
        bk=jax.random.uniform(ks[3], (1, hidden_dim), jnp.float32, -sk, sk),
        we_row=jax.random.uniform(ks[4], (1, hidden_dim), jnp.float32, -sh, sh),
        be=jax.random.uniform(ks[5], (1, 1), jnp.float32, -sh, sh),
    )


@functools.partial(jax.jit, static_argnames=("compute_dtype", "seq_tile"))
def additive_attention_fwd(params, query, key, value, mask,
                           compute_dtype=jnp.bfloat16, seq_tile=None):
    """query (B,Q) f32, key/value (S,B,K) f32, mask (S,B) {0,1} (1 = <pad>).
    Returns (context (B,K) f32, weights (S,B,1) f32)."""
    S, B, K = key.shape
    Q = query.shape[1]
    H = params["wk_t"].shape[1]

    ts = seq_tile if seq_tile is not None else _choose_seq_tile(
        S, K, jnp.dtype(compute_dtype).itemsize)
    if S % ts != 0 or (ts % 8 != 0 and ts != S):
        raise ValueError(f"seq_tile={ts} must divide S={S} and be a multiple of 8 (or S).")
    n_s = S // ts

    # Batch-major, lane-dense layouts. The transposes fuse with the bf16 cast
    # in XLA, so key/value make a single HBM pass before entering the kernel.
    q_b = query.astype(compute_dtype).reshape(B, 1, Q)
    k_b = jnp.transpose(key, (1, 0, 2)).astype(compute_dtype)        # (B,S,K)
    v_b = jnp.transpose(value, (1, 0, 2)).astype(compute_dtype)      # (B,S,K)
    mask_b = jnp.transpose(mask.astype(jnp.int32), (1, 0)).reshape(B, n_s, ts)

    wq = params["wq_t"].astype(compute_dtype)
    wk = params["wk_t"].astype(compute_dtype)
    bqk = (params["bq"] + params["bk"]).astype(jnp.float32)          # (1,H)
    we = params["we_row"].astype(jnp.float32)                        # (1,H)
    be = params["be"].astype(jnp.float32)                            # (1,1)

    ctx3, w3 = pl.pallas_call(
        _attn_kernel,
        out_shape=(
            jax.ShapeDtypeStruct((B, 1, K), jnp.float32),
            jax.ShapeDtypeStruct((B, n_s, ts), jnp.float32),
        ),
        grid_spec=pltpu.PrefetchScalarGridSpec(
            num_scalar_prefetch=0,
            grid=(B, n_s),                       # (parallel batch, sequence tiles)
            in_specs=[
                pl.BlockSpec((1, 1, Q), lambda b, s: (b, 0, 0)),
                pl.BlockSpec((1, ts, K), lambda b, s: (b, s, 0)),
                pl.BlockSpec((1, ts, K), lambda b, s: (b, s, 0)),
                pl.BlockSpec((1, n_s, ts), lambda b, s: (b, 0, 0)),
                pl.BlockSpec((Q, H), lambda b, s: (0, 0)),
                pl.BlockSpec((K, H), lambda b, s: (0, 0)),
                pl.BlockSpec((1, H), lambda b, s: (0, 0)),
                pl.BlockSpec((1, H), lambda b, s: (0, 0)),
                pl.BlockSpec((1, 1), lambda b, s: (0, 0)),
            ],
            out_specs=[
                pl.BlockSpec((1, 1, K), lambda b, s: (b, 0, 0)),
                pl.BlockSpec((1, n_s, ts), lambda b, s: (b, 0, 0)),
            ],
            scratch_shapes=[
                pltpu.VMEM((1, 1), jnp.float32),   # running max
                pltpu.VMEM((1, 1), jnp.float32),   # running softmax denominator
                pltpu.VMEM((1, K), jnp.float32),   # unnormalized context accumulator
                pltpu.VMEM((1, H), jnp.float32),   # query projection
            ],
        ),
        compiler_params=pltpu.CompilerParams(
            dimension_semantics=("parallel", "arbitrary"),
            vmem_limit_bytes=32 * 1024 * 1024,
        ),
    )(q_b, k_b, v_b, mask_b, wq, wk, bqk, we, be)

    context = ctx3.reshape(B, K)
    weights = jnp.transpose(w3.reshape(B, S), (1, 0))[:, :, None]    # (S,B,1)
    return context, weights


# --------------------------------------------------------------------------
# Pure-JAX references for verification
# --------------------------------------------------------------------------
def reference_fwd(params, query, key, value, mask, compute_dtype=jnp.float32):
    """compute_dtype=float32 reproduces the PyTorch module exactly;
    compute_dtype=bfloat16 mirrors the kernel's reduced-precision matmul operands."""
    cd = compute_dtype
    qp = (jnp.dot(query.astype(cd), params["wq_t"].astype(cd),
                  preferred_element_type=jnp.float32)
          + params["bq"] + params["bk"])                                     # (B,H)
    kp = jnp.einsum("sbk,kh->sbh", key.astype(cd), params["wk_t"].astype(cd),
                    preferred_element_type=jnp.float32)                       # (S,B,H)
    t = jnp.tanh(qp[None] + kp)
    f = jnp.sum(t * params["we_row"], axis=-1) + params["be"][0, 0]           # (S,B)
    f = jnp.where(mask > 0, -jnp.inf, f)
    w = jax.nn.softmax(f, axis=0)                                             # (S,B)
    ctx = jnp.einsum("sb,sbk->bk", w, value.astype(cd).astype(jnp.float32))   # (B,K)
    return ctx, w[:, :, None]


if __name__ == "__main__":
    S, B, QS, KS, HID = 16, 2, 32, 32, 32

    root = jax.random.PRNGKey(0)
    k_par, k_q, k_k, k_v = jax.random.split(root, 4)
    params = init_params(k_par, QS, KS, HID)

    query = jax.random.normal(k_q, (B, QS), jnp.float32)
    key_seq = jax.random.normal(k_k, (S, B, KS), jnp.float32)
    value = jax.random.normal(k_v, (S, B, KS), jnp.float32)
    # pad mask: batch 0 has 10 trailing <pad> tokens, batch 1 has none.
    lengths = jnp.array([6, 16], dtype=jnp.int32)
    mask = (jnp.arange(S)[:, None] >= lengths[None, :]).astype(jnp.int32)     # (S,B)

    # seq_tile=8 forces two sequence tiles so the online-softmax path is exercised.
    ctx, weights = additive_attention_fwd(params, query, key_seq, value, mask,
                                          seq_tile=8)
    ctx = jax.block_until_ready(ctx)
    weights = jax.block_until_ready(weights)

    assert ctx.shape == (B, KS) and weights.shape == (S, B, 1)

    # Matched-precision reference (bf16 matmul operands, f32 accumulation).
    ref_ctx, ref_w = reference_fwd(params, query, key_seq, value, mask,
                                   compute_dtype=jnp.bfloat16)
    assert jnp.allclose(ctx, ref_ctx, atol=2e-3, rtol=2e-3), "context mismatch"
    assert jnp.allclose(weights, ref_w, atol=5e-4, rtol=2e-3), "weights mismatch"

    # Full-f32 reference (the PyTorch module's math) within bf16 operand error.
    f32_ctx, f32_w = reference_fwd(params, query, key_seq, value, mask)
    assert jnp.allclose(ctx, f32_ctx, atol=3e-2, rtol=3e-2)
    assert jnp.allclose(weights, f32_w, atol=1e-2)

    # <pad> positions must receive exactly zero attention weight.
    assert jnp.all(weights[6:, 0, 0] == 0.0)

    print("KERNEL_OK")
</pallas_src>

<mosaic_0001>
module attributes {stable_mosaic.version = 11 : i64} {
  func.func @_attn_kernel(%arg0: i32, %arg1: i32, %arg2: memref<1x1x32xbf16, #tpu.memory_space<vmem>>, %arg3: memref<1x8x32xbf16, #tpu.memory_space<vmem>>, %arg4: memref<1x8x32xbf16, #tpu.memory_space<vmem>>, %arg5: memref<1x2x8xi32, #tpu.memory_space<vmem>>, %arg6: memref<32x32xbf16, #tpu.memory_space<vmem>>, %arg7: memref<32x32xbf16, #tpu.memory_space<vmem>>, %arg8: memref<1x32xf32, #tpu.memory_space<vmem>>, %arg9: memref<1x32xf32, #tpu.memory_space<vmem>>, %arg10: memref<1x1xf32, #tpu.memory_space<vmem>>, %arg11: memref<1x1x32xf32, #tpu.memory_space<vmem>>, %arg12: memref<1x2x8xf32, #tpu.memory_space<vmem>>, %arg13: memref<1x1xf32, #tpu.memory_space<vmem>>, %arg14: memref<1x1xf32, #tpu.memory_space<vmem>>, %arg15: memref<1x32xf32, #tpu.memory_space<vmem>>, %arg16: memref<1x32xf32, #tpu.memory_space<vmem>>) attributes {dimension_semantics = [#tpu.dimension_semantics<parallel>, #tpu.dimension_semantics<arbitrary>], iteration_bounds = array<i64: 2, 2>, scalar_prefetch = 0 : i64, scratch_operands = 4 : i64, tpu.core_type = #tpu.core_type<tc>, window_params = [{transform_indices = @transform_0, window_bounds = array<i64: 1, 1, 32>}, {transform_indices = @transform_1, window_bounds = array<i64: 1, 8, 32>}, {transform_indices = @transform_2, window_bounds = array<i64: 1, 8, 32>}, {transform_indices = @transform_3, window_bounds = array<i64: 1, 2, 8>}, {pipeline_mode = #tpu.pipeline_mode<synchronous>, transform_indices = @transform_4, window_bounds = array<i64: 32, 32>}, {pipeline_mode = #tpu.pipeline_mode<synchronous>, transform_indices = @transform_5, window_bounds = array<i64: 32, 32>}, {pipeline_mode = #tpu.pipeline_mode<synchronous>, transform_indices = @transform_6, window_bounds = array<i64: 1, 32>}, {pipeline_mode = #tpu.pipeline_mode<synchronous>, transform_indices = @transform_7, window_bounds = array<i64: 1, 32>}, {pipeline_mode = #tpu.pipeline_mode<synchronous>, transform_indices = @transform_8, window_bounds = array<i64: 1, 1>}, {transform_indices = @transform_9, window_bounds = array<i64: 1, 1, 32>}, {transform_indices = @transform_10, window_bounds = array<i64: 1, 2, 8>}]} {
    %c0_i32 = arith.constant 0 : i32
    %0 = arith.cmpi eq, %arg1, %c0_i32 : i32
    %1 = arith.extui %0 : i1 to i32
    %c0_i32_0 = arith.constant 0 : i32
    %2 = arith.cmpi ne, %1, %c0_i32_0 : i32
    scf.if %2 {
      %cst_41 = arith.constant 0xFF800000 : f32
      %63 = vector.broadcast %cst_41 : f32 to vector<1x1xf32>
      %c0_42 = arith.constant 0 : index
      %c0_43 = arith.constant 0 : index
      %64 = vector.load %arg13[%c0_42, %c0_43] : memref<1x1xf32, #tpu.memory_space<vmem>>, vector<1x1xf32>
      tpu.vector_store %arg13[%c0_42, %c0_43], %63 {strides = array<i32>} : memref<1x1xf32, #tpu.memory_space<vmem>>, vector<1x1xf32>,
      %cst_44 = arith.constant 0.000000e+00 : f32
      %65 = vector.broadcast %cst_44 : f32 to vector<1x1xf32>
      %c0_45 = arith.constant 0 : index
      %c0_46 = arith.constant 0 : index
      %66 = vector.load %arg14[%c0_45, %c0_46] : memref<1x1xf32, #tpu.memory_space<vmem>>, vector<1x1xf32>
      tpu.vector_store %arg14[%c0_45, %c0_46], %65 {strides = array<i32>} : memref<1x1xf32, #tpu.memory_space<vmem>>, vector<1x1xf32>,
      %cst_47 = arith.constant 0.000000e+00 : f32
      %67 = vector.broadcast %cst_47 : f32 to vector<1x32xf32>
      %c0_48 = arith.constant 0 : index
      %c0_49 = arith.constant 0 : index
      %68 = vector.load %arg15[%c0_48, %c0_49] : memref<1x32xf32, #tpu.memory_space<vmem>>, vector<1x32xf32>
      tpu.vector_store %arg15[%c0_48, %c0_49], %67 {strides = array<i32>} : memref<1x32xf32, #tpu.memory_space<vmem>>, vector<1x32xf32>,
      %c0_50 = arith.constant 0 : index
      %c0_51 = arith.constant 0 : index
      %c0_52 = arith.constant 0 : index
      %69 = vector.load %arg2[%c0_50, %c0_51, %c0_52] : memref<1x1x32xbf16, #tpu.memory_space<vmem>>, vector<1x1x32xbf16>
      %70 = vector.shape_cast %69 : vector<1x1x32xbf16> to vector<1x32xbf16>
      %c0_53 = arith.constant 0 : index
      %c0_54 = arith.constant 0 : index
      %71 = vector.load %arg6[%c0_53, %c0_54] : memref<32x32xbf16, #tpu.memory_space<vmem>>, vector<32x32xbf16>
      %cst_55 = arith.constant dense<0.000000e+00> : vector<1x32xf32>
      %72 = tpu.matmul %70, %71, %cst_55 {dimension_numbers = #tpu.dot_dimension_numbers<[1], [0], [0], [1], [0, 0, 1, 1], [], []>} : vector<1x32xbf16>, vector<32x32xbf16>, vector<1x32xf32> -> vector<1x32xf32>
      %c0_56 = arith.constant 0 : index
      %c0_57 = arith.constant 0 : index
      %73 = vector.load %arg8[%c0_56, %c0_57] : memref<1x32xf32, #tpu.memory_space<vmem>>, vector<1x32xf32>
      %74 = arith.addf %72, %73 : vector<1x32xf32>
      %c0_58 = arith.constant 0 : index
      %c0_59 = arith.constant 0 : index
      %75 = vector.load %arg16[%c0_58, %c0_59] : memref<1x32xf32, #tpu.memory_space<vmem>>, vector<1x32xf32>
      tpu.vector_store %arg16[%c0_58, %c0_59], %74 {strides = array<i32>} : memref<1x32xf32, #tpu.memory_space<vmem>>, vector<1x32xf32>,
    } else {
    }
    %c0 = arith.constant 0 : index
    %c0_1 = arith.constant 0 : index
    %c0_2 = arith.constant 0 : index
    %3 = vector.load %arg3[%c0, %c0_1, %c0_2] : memref<1x8x32xbf16, #tpu.memory_space<vmem>>, vector<1x8x32xbf16>
    %4 = vector.shape_cast %3 : vector<1x8x32xbf16> to vector<8x32xbf16>
    %c0_3 = arith.constant 0 : index
    %c0_4 = arith.constant 0 : index
    %5 = vector.load %arg7[%c0_3, %c0_4] : memref<32x32xbf16, #tpu.memory_space<vmem>>, vector<32x32xbf16>
    %cst = arith.constant dense<0.000000e+00> : vector<8x32xf32>
    %6 = tpu.matmul %4, %5, %cst {dimension_numbers = #tpu.dot_dimension_numbers<[1], [0], [0], [1], [0, 0, 1, 1], [], []>} : vector<8x32xbf16>, vector<32x32xbf16>, vector<8x32xf32> -> vector<8x32xf32>
    %c0_5 = arith.constant 0 : index
    %c0_6 = arith.constant 0 : index
    %7 = vector.load %arg16[%c0_5, %c0_6] : memref<1x32xf32, #tpu.memory_space<vmem>>, vector<1x32xf32>
    %8 = vector.broadcast %7 : vector<1x32xf32> to vector<8x32xf32>
    %9 = arith.addf %8, %6 : vector<8x32xf32>
    %10 = math.tanh %9 : vector<8x32xf32>
    %c0_7 = arith.constant 0 : index
    %c0_8 = arith.constant 0 : index
    %11 = vector.load %arg9[%c0_7, %c0_8] : memref<1x32xf32, #tpu.memory_space<vmem>>, vector<1x32xf32>
    %cst_9 = arith.constant dense<0.000000e+00> : vector<1x8xf32>
    %12 = tpu.matmul %11, %10, %cst_9 {dimension_numbers = #tpu.dot_dimension_numbers<[1], [1], [0], [0], [0, 0, 1, 0], [], []>} : vector<1x32xf32>, vector<8x32xf32>, vector<1x8xf32> -> vector<1x8xf32>
    %c0_10 = arith.constant 0 : index
    %c0_11 = arith.constant 0 : index
    %13 = vector.load %arg10[%c0_10, %c0_11] : memref<1x1xf32, #tpu.memory_space<vmem>>, vector<1x1xf32>
    %14 = vector.broadcast %13 : vector<1x1xf32> to vector<1x8xf32>
    %15 = arith.addf %12, %14 : vector<1x8xf32>
    %c0_12 = arith.constant 0 : index
    %16 = arith.index_cast %arg1 : i32 to index
    %c0_13 = arith.constant 0 : index
    %17 = vector.load %arg5[%c0_12, %16, %c0_13] : memref<1x2x8xi32, #tpu.memory_space<vmem>>, vector<1x1x8xi32>
    %18 = vector.shape_cast %17 : vector<1x1x8xi32> to vector<1x8xi32>
    %c0_i32_14 = arith.constant 0 : i32
    %19 = vector.broadcast %c0_i32_14 : i32 to vector<1x8xi32>
    %20 = arith.cmpi sgt, %18, %19 : vector<1x8xi32>
    %cst_15 = arith.constant 0xFF800000 : f32
    %21 = vector.broadcast %cst_15 : f32 to vector<1x8xf32>
    %22 = arith.select %20, %21, %15 : vector<1x8xi1>, vector<1x8xf32>
    %c0_16 = arith.constant 0 : index
    %23 = arith.index_cast %arg1 : i32 to index
    %c0_17 = arith.constant 0 : index
    %24 = vector.load %arg12[%c0_16, %23, %c0_17] : memref<1x2x8xf32, #tpu.memory_space<vmem>>, vector<1x1x8xf32>
    %25 = vector.shape_cast %24 : vector<1x1x8xf32> to vector<1x8xf32>
    %26 = vector.shape_cast %22 : vector<1x8xf32> to vector<1x1x8xf32>
    tpu.vector_store %arg12[%c0_16, %23, %c0_17], %26 {strides = array<i32>} : memref<1x2x8xf32, #tpu.memory_space<vmem>>, vector<1x1x8xf32>,
    %c0_18 = arith.constant 0 : index
    %c0_19 = arith.constant 0 : index
    %27 = vector.load %arg13[%c0_18, %c0_19] : memref<1x1xf32, #tpu.memory_space<vmem>>, vector<1x1xf32>
    %cst_20 = arith.constant dense<0xFF800000> : vector<1xf32>
    %28 = vector.multi_reduction <maximumf>, %22, %cst_20 [1] : vector<1x8xf32> to vector<1xf32>
    %29 = vector.shape_cast %28 : vector<1xf32> to vector<1x1xf32>
    %30 = arith.maximumf %27, %29 : vector<1x1xf32>
    %cst_21 = arith.constant 0xFF800000 : f32
    %31 = vector.broadcast %cst_21 : f32 to vector<1x1xf32>
    %32 = arith.cmpf oeq, %27, %31 : vector<1x1xf32>
    %33 = arith.subf %27, %30 : vector<1x1xf32>
    %34 = math.exp %33 : vector<1x1xf32>
    %cst_22 = arith.constant 0.000000e+00 : f32
    %35 = vector.broadcast %cst_22 : f32 to vector<1x1xf32>
    %36 = arith.select %32, %35, %34 : vector<1x1xi1>, vector<1x1xf32>
    %c0_i32_23 = arith.constant 0 : i32
    %37 = vector.broadcast %c0_i32_23 : i32 to vector<1x8xi32>
    %38 = arith.cmpi sgt, %18, %37 : vector<1x8xi32>
    %39 = vector.broadcast %30 : vector<1x1xf32> to vector<1x8xf32>
    %40 = arith.subf %22, %39 : vector<1x8xf32>
    %41 = math.exp %40 : vector<1x8xf32>
    %cst_24 = arith.constant 0.000000e+00 : f32
    %42 = vector.broadcast %cst_24 : f32 to vector<1x8xf32>
    %43 = arith.select %38, %42, %41 : vector<1x8xi1>, vector<1x8xf32>
    %c0_25 = arith.constant 0 : index
    %c0_26 = arith.constant 0 : index
    %44 = vector.load %arg14[%c0_25, %c0_26] : memref<1x1xf32, #tpu.memory_space<vmem>>, vector<1x1xf32>
    %45 = arith.mulf %36, %44 : vector<1x1xf32>
    %cst_27 = arith.constant dense<0.000000e+00> : vector<1xf32>
    %46 = vector.multi_reduction <add>, %43, %cst_27 [1] : vector<1x8xf32> to vector<1xf32>
    %47 = vector.shape_cast %46 : vector<1xf32> to vector<1x1xf32>
    %48 = arith.addf %45, %47 : vector<1x1xf32>
    %c0_28 = arith.constant 0 : index
    %c0_29 = arith.constant 0 : index
    %49 = vector.load %arg14[%c0_28, %c0_29] : memref<1x1xf32, #tpu.memory_space<vmem>>, vector<1x1xf32>
    tpu.vector_store %arg14[%c0_28, %c0_29], %48 {strides = array<i32>} : memref<1x1xf32, #tpu.memory_space<vmem>>, vector<1x1xf32>,
    %c0_30 = arith.constant 0 : index
    %c0_31 = arith.constant 0 : index
    %50 = vector.load %arg15[%c0_30, %c0_31] : memref<1x32xf32, #tpu.memory_space<vmem>>, vector<1x32xf32>
    %51 = vector.broadcast %36 : vector<1x1xf32> to vector<1x32xf32>
    %52 = arith.mulf %51, %50 : vector<1x32xf32>
    %c0_32 = arith.constant 0 : index
    %c0_33 = arith.constant 0 : index
    %c0_34 = arith.constant 0 : index
    %53 = vector.load %arg4[%c0_32, %c0_33, %c0_34] : memref<1x8x32xbf16, #tpu.memory_space<vmem>>, vector<1x8x32xbf16>
    %54 = vector.shape_cast %53 : vector<1x8x32xbf16> to vector<8x32xbf16>
    %55 = arith.extf %54 : vector<8x32xbf16> to vector<8x32xf32>
    %cst_35 = arith.constant dense<0.000000e+00> : vector<1x32xf32>
    %56 = tpu.matmul %43, %55, %cst_35 {dimension_numbers = #tpu.dot_dimension_numbers<[1], [0], [0], [1], [0, 0, 1, 1], [], []>} : vector<1x8xf32>, vector<8x32xf32>, vector<1x32xf32> -> vector<1x32xf32>
    %57 = arith.addf %52, %56 : vector<1x32xf32>
    %c0_36 = arith.constant 0 : index
    %c0_37 = arith.constant 0 : index
    %58 = vector.load %arg15[%c0_36, %c0_37] : memref<1x32xf32, #tpu.memory_space<vmem>>, vector<1x32xf32>
    tpu.vector_store %arg15[%c0_36, %c0_37], %57 {strides = array<i32>} : memref<1x32xf32, #tpu.memory_space<vmem>>, vector<1x32xf32>,
    %c0_38 = arith.constant 0 : index
    %c0_39 = arith.constant 0 : index
    %59 = vector.load %arg13[%c0_38, %c0_39] : memref<1x1xf32, #tpu.memory_space<vmem>>, vector<1x1xf32>
    tpu.vector_store %arg13[%c0_38, %c0_39], %30 {strides = array<i32>} : memref<1x1xf32, #tpu.memory_space<vmem>>, vector<1x1xf32>,
    %c1_i32 = arith.constant 1 : i32
    %60 = arith.cmpi eq, %arg1, %c1_i32 : i32
    %61 = arith.extui %60 : i1 to i32
    %c0_i32_40 = arith.constant 0 : i32
    %62 = arith.cmpi ne, %61, %c0_i32_40 : i32
    scf.if %62 {
      %c0_41 = arith.constant 0 : index
      %c0_42 = arith.constant 0 : index
      %63 = vector.load %arg14[%c0_41, %c0_42] : memref<1x1xf32, #tpu.memory_space<vmem>>, vector<1x1xf32>
      %cst_43 = arith.constant 1.000000e+00 : f32
      %64 = vector.broadcast %cst_43 : f32 to vector<1x1xf32>
      %65 = arith.divf %64, %63 : vector<1x1xf32>
      %c0_44 = arith.constant 0 : index
      %c0_45 = arith.constant 0 : index
      %c0_46 = arith.constant 0 : index
      %66 = vector.load %arg12[%c0_44, %c0_45, %c0_46] : memref<1x2x8xf32, #tpu.memory_space<vmem>>, vector<1x2x8xf32>
      %67 = vector.shape_cast %66 : vector<1x2x8xf32> to vector<2x8xf32>
      %c0_47 = arith.constant 0 : index
      %c0_48 = arith.constant 0 : index
      %68 = vector.load %arg13[%c0_47, %c0_48] : memref<1x1xf32, #tpu.memory_space<vmem>>, vector<1x1xf32>
      %69 = vector.broadcast %68 : vector<1x1xf32> to vector<2x8xf32>
      %70 = arith.subf %67, %69 : vector<2x8xf32>
      %71 = math.exp %70 : vector<2x8xf32>
      %72 = vector.broadcast %65 : vector<1x1xf32> to vector<2x8xf32>
      %73 = arith.mulf %71, %72 : vector<2x8xf32>
      %c0_49 = arith.constant 0 : index
      %c0_50 = arith.constant 0 : index
      %c0_51 = arith.constant 0 : index
      %74 = vector.load %arg12[%c0_49, %c0_50, %c0_51] : memref<1x2x8xf32, #tpu.memory_space<vmem>>, vector<1x2x8xf32>
      %75 = vector.shape_cast %74 : vector<1x2x8xf32> to vector<2x8xf32>
      %76 = vector.shape_cast %73 : vector<2x8xf32> to vector<1x2x8xf32>
      tpu.vector_store %arg12[%c0_49, %c0_50, %c0_51], %76 {strides = array<i32>} : memref<1x2x8xf32, #tpu.memory_space<vmem>>, vector<1x2x8xf32>,
      %c0_52 = arith.constant 0 : index
      %c0_53 = arith.constant 0 : index
      %77 = vector.load %arg15[%c0_52, %c0_53] : memref<1x32xf32, #tpu.memory_space<vmem>>, vector<1x32xf32>
      %78 = vector.broadcast %65 : vector<1x1xf32> to vector<1x32xf32>
      %79 = arith.mulf %77, %78 : vector<1x32xf32>
      %c0_54 = arith.constant 0 : index
      %c0_55 = arith.constant 0 : index
      %c0_56 = arith.constant 0 : index
      %80 = vector.load %arg11[%c0_54, %c0_55, %c0_56] : memref<1x1x32xf32, #tpu.memory_space<vmem>>, vector<1x1x32xf32>
      %81 = vector.shape_cast %80 : vector<1x1x32xf32> to vector<1x32xf32>
      %82 = vector.shape_cast %79 : vector<1x32xf32> to vector<1x1x32xf32>
      tpu.vector_store %arg11[%c0_54, %c0_55, %c0_56], %82 {strides = array<i32>} : memref<1x1x32xf32, #tpu.memory_space<vmem>>, vector<1x1x32xf32>,
    } else {
    }
    return
  }
  func.func @transform_0(%arg0: i32, %arg1: i32) -> (i32, i32, i32) {
    %c0_i32 = arith.constant 0 : i32
    %c0_i32_0 = arith.constant 0 : i32
    %c0_i32_1 = arith.constant 0 : i32
    return %arg0, %c0_i32, %c0_i32_0 : i32, i32, i32
  }
  func.func @transform_1(%arg0: i32, %arg1: i32) -> (i32, i32, i32) {
    %c0_i32 = arith.constant 0 : i32
    %c0_i32_0 = arith.constant 0 : i32
    return %arg0, %arg1, %c0_i32 : i32, i32, i32
  }
  func.func @transform_2(%arg0: i32, %arg1: i32) -> (i32, i32, i32) {
    %c0_i32 = arith.constant 0 : i32
    %c0_i32_0 = arith.constant 0 : i32
    return %arg0, %arg1, %c0_i32 : i32, i32, i32
  }
  func.func @transform_3(%arg0: i32, %arg1: i32) -> (i32, i32, i32) {
    %c0_i32 = arith.constant 0 : i32
    %c0_i32_0 = arith.constant 0 : i32
    %c0_i32_1 = arith.constant 0 : i32
    return %arg0, %c0_i32, %c0_i32_0 : i32, i32, i32
  }
  func.func @transform_4(%arg0: i32, %arg1: i32) -> (i32, i32) {
    %c0_i32 = arith.constant 0 : i32
    %c0_i32_0 = arith.constant 0 : i32
    %c0_i32_1 = arith.constant 0 : i32
    return %c0_i32, %c0_i32_0 : i32, i32
  }
  func.func @transform_5(%arg0: i32, %arg1: i32) -> (i32, i32) {
    %c0_i32 = arith.constant 0 : i32
    %c0_i32_0 = arith.constant 0 : i32
    %c0_i32_1 = arith.constant 0 : i32
    return %c0_i32, %c0_i32_0 : i32, i32
  }
  func.func @transform_6(%arg0: i32, %arg1: i32) -> (i32, i32) {
    %c0_i32 = arith.constant 0 : i32
    %c0_i32_0 = arith.constant 0 : i32
    %c0_i32_1 = arith.constant 0 : i32
    return %c0_i32, %c0_i32_0 : i32, i32
  }
  func.func @transform_7(%arg0: i32, %arg1: i32) -> (i32, i32) {
    %c0_i32 = arith.constant 0 : i32
    %c0_i32_0 = arith.constant 0 : i32
    %c0_i32_1 = arith.constant 0 : i32
    return %c0_i32, %c0_i32_0 : i32, i32
  }
  func.func @transform_8(%arg0: i32, %arg1: i32) -> (i32, i32) {
    %c0_i32 = arith.constant 0 : i32
    %c0_i32_0 = arith.constant 0 : i32
    %c0_i32_1 = arith.constant 0 : i32
    return %c0_i32, %c0_i32_0 : i32, i32
  }
  func.func @transform_9(%arg0: i32, %arg1: i32) -> (i32, i32, i32) {
    %c0_i32 = arith.constant 0 : i32
    %c0_i32_0 = arith.constant 0 : i32
    %c0_i32_1 = arith.constant 0 : i32
    return %arg0, %c0_i32, %c0_i32_0 : i32, i32, i32
  }
  func.func @transform_10(%arg0: i32, %arg1: i32) -> (i32, i32, i32) {
    %c0_i32 = arith.constant 0 : i32
    %c0_i32_0 = arith.constant 0 : i32
    %c0_i32_1 = arith.constant 0 : i32
    return %arg0, %c0_i32, %c0_i32_0 : i32, i32, i32
  }
}

</mosaic_0001>

<llo_original>
// kernel: additive_attention_fwd.1
$region0: #{additive_attention_fwd.1}
  #allocation0 [shape = 'u32[]', space=smem, size = 0x4, offset = 0x4, fixed_abs, tag = 'smem constant byte address 0x4 - core index']
  #allocation1 [shape = 'u32[144,128]{1,0:T(1,128)}', space=vmem, size = 0x12000, scoped, tag = 'internal scratch']
  #allocation2 [shape = 'f32[1,1]{1,0:T(1,128)}', space=vmem, size = 0x200, scoped, tag = 'scratch operand']
  #allocation3 [shape = 'f32[1,1]{1,0:T(1,128)}', space=vmem, size = 0x200, scoped, tag = 'scratch operand']
  #allocation4 [shape = 'f32[1,32]{1,0:T(1,128)}', space=vmem, size = 0x200, scoped, tag = 'scratch operand']
  #allocation5 [shape = 'f32[1,32]{1,0:T(1,128)}', space=vmem, size = 0x200, scoped, tag = 'scratch operand']
  #allocation6 [shape = 'f32[1,1]{1,0:T(1,128)S(1)}', space=vmem, size = 0x200, scoped, tag = 'scoped memory for additive_attention_fwd.1']
  %s0 = inlined_call_operand.vmem [shape: bf16[2,1,32], index: 0, kind: input, shape index: {}]
  %s1 = inlined_call_operand.vmem [shape: bf16[2,16,32], index: 1, kind: input, shape index: {}]
  %s2 = inlined_call_operand.vmem [shape: bf16[2,16,32], index: 2, kind: input, shape index: {}]
  %s3 = inlined_call_operand.vmem [shape: s32[2,2,8], index: 3, kind: input, shape index: {}]
  %s4 = inlined_call_operand.vmem [shape: bf16[32,32], index: 4, kind: input, shape index: {}]
  %s5 = inlined_call_operand.vmem [shape: bf16[32,32], index: 5, kind: input, shape index: {}]
  %s6 = inlined_call_operand.vmem [shape: f32[1,32], index: 6, kind: input, shape index: {}]
  %s7 = inlined_call_operand.vmem [shape: f32[1,32], index: 7, kind: input, shape index: {}]
  %s8 = inlined_call_operand.<no memory space> [shape: f32[1,1], index: 8, kind: input, shape index: {}]
  %s9 = inlined_call_operand.hbm [shape: f32[2,1,32], index: 9, kind: output, shape index: {0}]
  %s10 = inlined_call_operand.vmem [shape: f32[2,2,8], index: 10, kind: output, shape index: {1}]
  %11 = xla_tuple %s9, %s10
  %s12 = sld [smem:[#allocation0]]
  $region85: #{additive_attention_fwd.1} parent=0
    _
  %s14 = ssub.s32 1, %s12
  %s15 = scalar_select 0, %s14, %s12
  %v16 = vstv %s8
  %17 = vst [vmem:[#allocation6] sm:$0x1] %v16
  $region1: #{additive_attention_fwd.1} parent=0
    #allocation7 [shape = 'u8[1024]{0}', space=vmem, size = 0x400, scoped, tag = 'output window, operand 0']
    #allocation8 [shape = 's32[2]{0}', space=sflag, size = 0x8, scoped, tag = 'scoped memory for additive_attention_fwd.1']
    %18 = vsyncpa [#allocation8], 0
    %s19 = scalar_lea.sflag [#allocation8], 1
    %20 = vsyncpa %s19, 0
    loop: start=0, step=1, limit=6
    $region2: #{additive_attention_fwd.1} parent=1 // loop_pre_header
      _
    $region3: #{additive_attention_fwd.1} parent=1 // loop_header
      %s22 = sphi 0, %s26
      %p23 = scmp.ge.s32.totalorder %s22, 6
      %s29 = sphi 0, %s41
      %s30 = sphi 0, %s37
      %s31 = sphi 0, %s29
      %s32 = sphi 0, %s30
      %s33 = sphi 0, %s31
      %s34 = sphi 0, %s32
      %s44 = sphi 0, %s46
      %s47 = sphi 0, %s44
      %s48 = sphi 0, %s47
      %s64 = sphi 0, %s48
      %s72 = sphi 0, %s74
      %s75 = sphi 0, %s72
      %s76 = sphi 0, %s75
      %s92 = sphi 0, %s76
      %s100 = sphi 0, %s102
      %s103 = sphi 0, %s100
      %s104 = sphi 0, %s103
      %s120 = sphi 0, %s104
      %s126 = sphi 0, %s128
      %s129 = sphi 0, %s126
      %s130 = sphi 0, %s129
      %s146 = sphi 0, %s130
      %s150 = sphi 0, %s150
      %s152 = sphi 0, %s150
      %s153 = sphi 0, %s152
      %s167 = sphi 0, %s153
      %s171 = sphi 0, %s171
      %s173 = sphi 0, %s171
      %s174 = sphi 0, %s173
      %s188 = sphi 0, %s174
      %s192 = sphi 0, %s192
      %s194 = sphi 0, %s192
      %s195 = sphi 0, %s194
      %s209 = sphi 0, %s195
      %s213 = sphi 0, %s213
      %s215 = sphi 0, %s213
      %s216 = sphi 0, %s215
      %s230 = sphi 0, %s216
      %s234 = sphi 0, %s234
      %s236 = sphi 0, %s234
      %s237 = sphi 0, %s236
      %s251 = sphi 0, %s237
      %s257 = sphi 0, %s259
      %s260 = sphi 0, %s257
      %s261 = sphi 0, %s260
      %s277 = sphi 0, %s261
      %s283 = sphi 0, %s285
      %s286 = sphi 0, %s283
      %s287 = sphi 0, %s286
      %s303 = sphi 0, %s287
    $region4: #{additive_attention_fwd.1} parent=1 // loop_header_branch
      %25 = sbr.rel (%p23) target = $region8
    $region5: #{additive_attention_fwd.1} parent=1 // loop_body
      %s27 = ssub.s32 %s22, 1
      %s28 = ssub.s32 %s22, 2
      %s35 = sadd.s32 1, %s30
      %p36 = scmp.ge.s32.totalorder %s35, 2
      %s37 = scalar_select %p36, 0, %s35
      %s38 = sadd.s32 1, %s29
      %s39 = scalar_select %p36, %s38, %s29
      %p40 = scmp.ge.s32.totalorder %s39, 2
      %s41 = scalar_select %p40, 0, %s39
      %s42 = ssub.s32 %s29, %s41
      %p43 = scmp.eq.s32.totalorder %s42, 0
      %s45 = sadd.s32 %s44, 1
      %s46 = scalar_select %p43, %s44, %s45
      %p49 = pneg %p43
      %p50 = scmp.eq.s32.totalorder %s22, 3
      %p51 = por %p49, %p50
      %p52 = scmp.ne.s32.totalorder %s44, %s47
      %p53 = scmp.eq.s32.totalorder %s22, 0
      %p54 = por %p52, %p53
      %p55 = scmp.ne.s32.totalorder %s44, %s47
      %p56 = scmp.eq.s32.totalorder %s27, 3
      %p57 = por %p55, %p56
      %p58 = scmp.ne.s32.totalorder %s47, %s48
      %p59 = scmp.eq.s32.totalorder %s27, 0
      %p60 = por %p58, %p59
      %p61 = scmp.ne.s32.totalorder %s47, %s48
      %p62 = scmp.eq.s32.totalorder %s28, 3
      %p63 = por %p61, %p62
      %p65 = scmp.ne.s32.totalorder %s48, %s64
      %p66 = scmp.eq.s32.totalorder %s28, 0
      %p67 = por %p65, %p66
      %s68 = ssub.s32 %s29, %s41
      %s69 = ssub.s32 %s30, %s37
      %s70 = sor.u32 %s68, %s69
      %p71 = scmp.eq.s32.totalorder %s70, 0
      %s73 = sadd.s32 %s72, 1
      %s74 = scalar_select %p71, %s72, %s73
      %p77 = pneg %p71
      %p78 = scmp.eq.s32.totalorder %s22, 3
      %p79 = por %p77, %p78
      %p80 = scmp.ne.s32.totalorder %s72, %s75
      %p81 = scmp.eq.s32.totalorder %s22, 0
      %p82 = por %p80, %p81
      %p83 = scmp.ne.s32.totalorder %s72, %s75
      %p84 = scmp.eq.s32.totalorder %s27, 3
      %p85 = por %p83, %p84
      %p86 = scmp.ne.s32.totalorder %s75, %s76
      %p87 = scmp.eq.s32.totalorder %s27, 0
      %p88 = por %p86, %p87
      %p89 = scmp.ne.s32.totalorder %s75, %s76
      %p90 = scmp.eq.s32.totalorder %s28, 3
      %p91 = por %p89, %p90
      %p93 = scmp.ne.s32.totalorder %s76, %s92
      %p94 = scmp.eq.s32.totalorder %s28, 0
      %p95 = por %p93, %p94
      %s96 = ssub.s32 %s29, %s41
      %s97 = ssub.s32 %s30, %s37
      %s98 = sor.u32 %s96, %s97
      %p99 = scmp.eq.s32.totalorder %s98, 0
      %s101 = sadd.s32 %s100, 1
      %s102 = scalar_select %p99, %s100, %s101
      %p105 = pneg %p99
      %p106 = scmp.eq.s32.totalorder %s22, 3
      %p107 = por %p105, %p106
      %p108 = scmp.ne.s32.totalorder %s100, %s103
      %p109 = scmp.eq.s32.totalorder %s22, 0
      %p110 = por %p108, %p109
      %p111 = scmp.ne.s32.totalorder %s100, %s103
      %p112 = scmp.eq.s32.totalorder %s27, 3
      %p113 = por %p111, %p112
      %p114 = scmp.ne.s32.totalorder %s103, %s104
      %p115 = scmp.eq.s32.totalorder %s27, 0
      %p116 = por %p114, %p115
      %p117 = scmp.ne.s32.totalorder %s103, %s104
      %p118 = scmp.eq.s32.totalorder %s28, 3
      %p119 = por %p117, %p118
      %p121 = scmp.ne.s32.totalorder %s104, %s120
      %p122 = scmp.eq.s32.totalorder %s28, 0
      %p123 = por %p121, %p122
      %s124 = ssub.s32 %s29, %s41
      %p125 = scmp.eq.s32.totalorder %s124, 0
      %s127 = sadd.s32 %s126, 1
      %s128 = scalar_select %p125, %s126, %s127
      %p131 = pneg %p125
      %p132 = scmp.eq.s32.totalorder %s22, 3
      %p133 = por %p131, %p132
      %p134 = scmp.ne.s32.totalorder %s126, %s129
      %p135 = scmp.eq.s32.totalorder %s22, 0
      %p136 = por %p134, %p135
      %p137 = scmp.ne.s32.totalorder %s126, %s129
      %p138 = scmp.eq.s32.totalorder %s27, 3
      %p139 = por %p137, %p138
      %p140 = scmp.ne.s32.totalorder %s129, %s130
      %p141 = scmp.eq.s32.totalorder %s27, 0
      %p142 = por %p140, %p141
      %p143 = scmp.ne.s32.totalorder %s129, %s130
      %p144 = scmp.eq.s32.totalorder %s28, 3
      %p145 = por %p143, %p144
      %p147 = scmp.ne.s32.totalorder %s130, %s146
      %p148 = scmp.eq.s32.totalorder %s28, 0
      %p149 = por %p147, %p148
      %s151 = sadd.s32 %s150, 1
      %p154 = scmp.eq.s32.totalorder %s22, 3
      %p155 = scmp.ne.s32.totalorder %s150, %s152
      %p156 = scmp.eq.s32.totalorder %s22, 0
      %p157 = por %p155, %p156
      %p158 = scmp.ne.s32.totalorder %s150, %s152
      %p159 = scmp.eq.s32.totalorder %s27, 3
      %p160 = por %p158, %p159
      %p161 = scmp.ne.s32.totalorder %s152, %s153
      %p162 = scmp.eq.s32.totalorder %s27, 0
      %p163 = por %p161, %p162
      %p164 = scmp.ne.s32.totalorder %s152, %s153
      %p165 = scmp.eq.s32.totalorder %s28, 3
      %p166 = por %p164, %p165
      %p168 = scmp.ne.s32.totalorder %s153, %s167
      %p169 = scmp.eq.s32.totalorder %s28, 0
      %p170 = por %p168, %p169
      %s172 = sadd.s32 %s171, 1
      %p175 = scmp.eq.s32.totalorder %s22, 3
      %p176 = scmp.ne.s32.totalorder %s171, %s173
      %p177 = scmp.eq.s32.totalorder %s22, 0
      %p178 = por %p176, %p177
      %p179 = scmp.ne.s32.totalorder %s171, %s173
      %p180 = scmp.eq.s32.totalorder %s27, 3
      %p181 = por %p179, %p180
      %p182 = scmp.ne.s32.totalorder %s173, %s174
      %p183 = scmp.eq.s32.totalorder %s27, 0
      %p184 = por %p182, %p183
      %p185 = scmp.ne.s32.totalorder %s173, %s174
      %p186 = scmp.eq.s32.totalorder %s28, 3
      %p187 = por %p185, %p186
      %p189 = scmp.ne.s32.totalorder %s174, %s188
      %p190 = scmp.eq.s32.totalorder %s28, 0
      %p191 = por %p189, %p190
      %s193 = sadd.s32 %s192, 1
      %p196 = scmp.eq.s32.totalorder %s22, 3
      %p197 = scmp.ne.s32.totalorder %s192, %s194
      %p198 = scmp.eq.s32.totalorder %s22, 0
      %p199 = por %p197, %p198
      %p200 = scmp.ne.s32.totalorder %s192, %s194
      %p201 = scmp.eq.s32.totalorder %s27, 3
      %p202 = por %p200, %p201
      %p203 = scmp.ne.s32.totalorder %s194, %s195
      %p204 = scmp.eq.s32.totalorder %s27, 0
      %p205 = por %p203, %p204
      %p206 = scmp.ne.s32.totalorder %s194, %s195
      %p207 = scmp.eq.s32.totalorder %s28, 3
      %p208 = por %p206, %p207
      %p210 = scmp.ne.s32.totalorder %s195, %s209
      %p211 = scmp.eq.s32.totalorder %s28, 0
      %p212 = por %p210, %p211
      %s214 = sadd.s32 %s213, 1
      %p217 = scmp.eq.s32.totalorder %s22, 3
      %p218 = scmp.ne.s32.totalorder %s213, %s215
      %p219 = scmp.eq.s32.totalorder %s22, 0
      %p220 = por %p218, %p219
      %p221 = scmp.ne.s32.totalorder %s213, %s215
      %p222 = scmp.eq.s32.totalorder %s27, 3
      %p223 = por %p221, %p222
      %p224 = scmp.ne.s32.totalorder %s215, %s216
      %p225 = scmp.eq.s32.totalorder %s27, 0
      %p226 = por %p224, %p225
      %p227 = scmp.ne.s32.totalorder %s215, %s216
      %p228 = scmp.eq.s32.totalorder %s28, 3
      %p229 = por %p227, %p228
      %p231 = scmp.ne.s32.totalorder %s216, %s230
      %p232 = scmp.eq.s32.totalorder %s28, 0
      %p233 = por %p231, %p232
      %s235 = sadd.s32 %s234, 1
      %p238 = scmp.eq.s32.totalorder %s22, 3
      %p239 = scmp.ne.s32.totalorder %s234, %s236
      %p240 = scmp.eq.s32.totalorder %s22, 0
      %p241 = por %p239, %p240
      %p242 = scmp.ne.s32.totalorder %s234, %s236
      %p243 = scmp.eq.s32.totalorder %s27, 3
      %p244 = por %p242, %p243
      %p245 = scmp.ne.s32.totalorder %s236, %s237
      %p246 = scmp.eq.s32.totalorder %s27, 0
      %p247 = por %p245, %p246
      %p248 = scmp.ne.s32.totalorder %s236, %s237
      %p249 = scmp.eq.s32.totalorder %s28, 3
      %p250 = por %p248, %p249
      %p252 = scmp.ne.s32.totalorder %s237, %s251
      %p253 = scmp.eq.s32.totalorder %s28, 0
      %p254 = por %p252, %p253
      %s255 = ssub.s32 %s29, %s41
      %p256 = scmp.eq.s32.totalorder %s255, 0
      %s258 = sadd.s32 %s257, 1
      %s259 = scalar_select %p256, %s257, %s258
      %p262 = pneg %p256
      %p263 = scmp.eq.s32.totalorder %s22, 3
      %p264 = por %p262, %p263
      %p265 = scmp.ne.s32.totalorder %s257, %s260
      %p266 = scmp.eq.s32.totalorder %s22, 0
      %p267 = por %p265, %p266
      %p268 = scmp.ne.s32.totalorder %s257, %s260
      %p269 = scmp.eq.s32.totalorder %s27, 3
      %p270 = por %p268, %p269
      %p271 = scmp.ne.s32.totalorder %s260, %s261
      %p272 = scmp.eq.s32.totalorder %s27, 0
      %p273 = por %p271, %p272
      %p274 = scmp.ne.s32.totalorder %s260, %s261
      %p275 = scmp.eq.s32.totalorder %s28, 3
      %p276 = por %p274, %p275
      %p278 = scmp.ne.s32.totalorder %s261, %s277
      %p279 = scmp.eq.s32.totalorder %s28, 0
      %p280 = por %p278, %p279
      %s281 = ssub.s32 %s29, %s41
      %p282 = scmp.eq.s32.totalorder %s281, 0
      %s284 = sadd.s32 %s283, 1
      %s285 = scalar_select %p282, %s283, %s284
      %p288 = pneg %p282
      %p289 = scmp.eq.s32.totalorder %s22, 3
      %p290 = por %p288, %p289
      %p291 = scmp.ne.s32.totalorder %s283, %s286
      %p292 = scmp.eq.s32.totalorder %s22, 0
      %p293 = por %p291, %p292
      %p294 = scmp.ne.s32.totalorder %s283, %s286
      %p295 = scmp.eq.s32.totalorder %s27, 3
      %p296 = por %p294, %p295
      %p297 = scmp.ne.s32.totalorder %s286, %s287
      %p298 = scmp.eq.s32.totalorder %s27, 0
      %p299 = por %p297, %p298
      %p300 = scmp.ne.s32.totalorder %s286, %s287
      %p301 = scmp.eq.s32.totalorder %s28, 3
      %p302 = por %p300, %p301
      %p304 = scmp.ne.s32.totalorder %s287, %s303
      %p305 = scmp.eq.s32.totalorder %s28, 0
      %p306 = por %p304, %p305
      %p307 = scmp.le.s32.totalorder 1, %s22
      %p308 = scmp.lt.s32.totalorder %s22, 5
      %p309 = pnand %p307, %p308
      %p310 = pneg %p309
      // Predicated region
      $region9: #{additive_attention_fwd.1} parent=5 // pred_check
        _
      $region10: #{additive_attention_fwd.1} parent=5 // pred_check_branch
        %312 = sbr.rel (%p309) target = $region12
      $region11: #{additive_attention_fwd.1} parent=5 // pred_region
        %s313 = ssub.s32 %s22, 1
        // Predicated region
        $region13: #{additive_attention_fwd.1} parent=11 // pred_check
          %p314 = pneg %p163
        $region14: #{additive_attention_fwd.1} parent=11 // pred_check_branch
          %316 = sbr.rel (%p314) target = $region16
        $region15: #{additive_attention_fwd.1} parent=11 // pred_region
          _
        $region16: #{additive_attention_fwd.1} parent=11 // pred_fallthru
          _
        // Predicated region
        $region17: #{additive_attention_fwd.1} parent=11 // pred_check
          %p317 = pneg %p184
        $region18: #{additive_attention_fwd.1} parent=11 // pred_check_branch
          %319 = sbr.rel (%p317) target = $region20
        $region19: #{additive_attention_fwd.1} parent=11 // pred_region
          _
        $region20: #{additive_attention_fwd.1} parent=11 // pred_fallthru
          _
        // Predicated region
        $region21: #{additive_attention_fwd.1} parent=11 // pred_check
          %p320 = pneg %p205
        $region22: #{additive_attention_fwd.1} parent=11 // pred_check_branch
          %322 = sbr.rel (%p320) target = $region24
        $region23: #{additive_attention_fwd.1} parent=11 // pred_region
          _
        $region24: #{additive_attention_fwd.1} parent=11 // pred_fallthru
          _
        // Predicated region
        $region25: #{additive_attention_fwd.1} parent=11 // pred_check
          %p323 = pneg %p226
        $region26: #{additive_attention_fwd.1} parent=11 // pred_check_branch
          %325 = sbr.rel (%p323) target = $region28
        $region27: #{additive_attention_fwd.1} parent=11 // pred_region
          _
        $region28: #{additive_attention_fwd.1} parent=11 // pred_fallthru
          _
        // Predicated region
        $region29: #{additive_attention_fwd.1} parent=11 // pred_check
          %p326 = pneg %p247
        $region30: #{additive_attention_fwd.1} parent=11 // pred_check_branch
          %328 = sbr.rel (%p326) target = $region32
        $region31: #{additive_attention_fwd.1} parent=11 // pred_region
          _
        $region32: #{additive_attention_fwd.1} parent=11 // pred_fallthru
          _
      $region12: #{additive_attention_fwd.1} parent=5 // pred_fallthru
        _
      %p329 = scmp.lt.s32.totalorder %s22, 4
      // Predicated region
      $region33: #{additive_attention_fwd.1} parent=5 // pred_check
        %p330 = pneg %p329
      $region34: #{additive_attention_fwd.1} parent=5 // pred_check_branch
        %332 = sbr.rel (%p330) target = $region36
      $region35: #{additive_attention_fwd.1} parent=5 // pred_region
        // Predicated region
        $region37: #{additive_attention_fwd.1} parent=35 // pred_check
          %p333 = pneg %p54
        $region38: #{additive_attention_fwd.1} parent=35 // pred_check_branch
          %335 = sbr.rel (%p333) target = $region40
        $region39: #{additive_attention_fwd.1} parent=35 // pred_region
          %p336 = scmp.lt.s32.totalorder %s29, 1
          %s337 = scalar_select %p336, %s29, 1
          %s338 = scalar_lea.vmem %s0, %s337
        $region40: #{additive_attention_fwd.1} parent=35 // pred_fallthru
          _
        // Predicated region
        $region41: #{additive_attention_fwd.1} parent=35 // pred_check
          %p339 = pneg %p82
        $region42: #{additive_attention_fwd.1} parent=35 // pred_check_branch
          %341 = sbr.rel (%p339) target = $region44
        $region43: #{additive_attention_fwd.1} parent=35 // pred_region
          %p342 = scmp.lt.s32.totalorder %s29, 1
          %s343 = scalar_select %p342, %s29, 1
          %p344 = scmp.lt.s32.totalorder %s30, 1
          %s345 = scalar_select %p344, %s30, 1
          %s346 = smul.addr %s343, 2
          %s347 = sadd.s32 %s345, %s346
          %s348 = smul.addr %s347, 4
          %s349 = scalar_lea.vmem %s1, %s348
        $region44: #{additive_attention_fwd.1} parent=35 // pred_fallthru
          _
        // Predicated region
        $region45: #{additive_attention_fwd.1} parent=35 // pred_check
          %p350 = pneg %p110
        $region46: #{additive_attention_fwd.1} parent=35 // pred_check_branch
          %352 = sbr.rel (%p350) target = $region48
        $region47: #{additive_attention_fwd.1} parent=35 // pred_region
          %p353 = scmp.lt.s32.totalorder %s29, 1
          %s354 = scalar_select %p353, %s29, 1
          %p355 = scmp.lt.s32.totalorder %s30, 1
          %s356 = scalar_select %p355, %s30, 1
          %s357 = smul.addr %s354, 2
          %s358 = sadd.s32 %s356, %s357
          %s359 = smul.addr %s358, 4
          %s360 = scalar_lea.vmem %s2, %s359
        $region48: #{additive_attention_fwd.1} parent=35 // pred_fallthru
          _
        // Predicated region
        $region49: #{additive_attention_fwd.1} parent=35 // pred_check
          %p361 = pneg %p136
        $region50: #{additive_attention_fwd.1} parent=35 // pred_check_branch
          %363 = sbr.rel (%p361) target = $region52
        $region51: #{additive_attention_fwd.1} parent=35 // pred_region
          %p364 = scmp.lt.s32.totalorder %s29, 1
          %s365 = scalar_select %p364, %s29, 1
          %s366 = smul.addr %s365, 2
          %s367 = scalar_lea.vmem %s3, %s366
        $region52: #{additive_attention_fwd.1} parent=35 // pred_fallthru
          _
      $region36: #{additive_attention_fwd.1} parent=5 // pred_fallthru
        _
      %p368 = scmp.le.s32.totalorder 1, %s22
      %p369 = scmp.lt.s32.totalorder %s22, 5
      %p370 = pnand %p368, %p369
      %p371 = pneg %p370
      // Predicated region
      $region53: #{additive_attention_fwd.1} parent=5 // pred_check
        _
      $region54: #{additive_attention_fwd.1} parent=5 // pred_check_branch
        %373 = sbr.rel (%p370) target = $region56
      $region55: #{additive_attention_fwd.1} parent=5 // pred_region
        %s374 = ssub.s32 %s22, 1
        %p375 = scmp.lt.s32.totalorder %s31, 1
        %s376 = scalar_select %p375, %s31, 1
        %s377 = scalar_lea.vmem %s0, %s376
        %p378 = pneg %p60
        %p379 = pneg %p57
        %p380 = scmp.lt.s32.totalorder %s31, 1
        %s381 = scalar_select %p380, %s31, 1
        %p382 = scmp.lt.s32.totalorder %s32, 1
        %s383 = scalar_select %p382, %s32, 1
        %s384 = smul.addr %s381, 2
        %s385 = sadd.s32 %s383, %s384
        %s386 = smul.addr %s385, 4
        %s387 = scalar_lea.vmem %s1, %s386
        %p388 = pneg %p88
        %p389 = pneg %p85
        %p390 = scmp.lt.s32.totalorder %s31, 1
        %s391 = scalar_select %p390, %s31, 1
        %p392 = scmp.lt.s32.totalorder %s32, 1
        %s393 = scalar_select %p392, %s32, 1
        %s394 = smul.addr %s391, 2
        %s395 = sadd.s32 %s393, %s394
        %s396 = smul.addr %s395, 4
        %s397 = scalar_lea.vmem %s2, %s396
        %p398 = pneg %p116
        %p399 = pneg %p113
        %p400 = scmp.lt.s32.totalorder %s31, 1
        %s401 = scalar_select %p400, %s31, 1
        %s402 = smul.addr %s401, 2
        %s403 = scalar_lea.vmem %s3, %s402
        %p404 = pneg %p142
        %p405 = pneg %p139
        %p406 = pneg %p163
        %p407 = pneg %p160
        %p408 = pneg %p184
        %p409 = pneg %p181
        %p410 = pneg %p205
        %p411 = pneg %p202
        %p412 = pneg %p226
        %p413 = pneg %p223
        %p414 = pneg %p247
        %p415 = pneg %p244
        %p416 = pneg %p273
        %p417 = pneg %p270
        %s418 = sand.u32 %s260, 1
        %s419 = scalar_lea.sflag [#allocation8], %s418
        %s420 = sand.u32 %s260, 1
        %s421 = scalar_lea.vmem [#allocation7], %s420
        %p422 = pneg %p299
        %p423 = pneg %p296
        %p424 = scmp.lt.s32.totalorder %s31, 1
        %s425 = scalar_select %p424, %s31, 1
        %s426 = smul.addr %s425, 2
        %s427 = scalar_lea.vmem %s10, %s426
        %p428 = scmp.lt.s32.totalorder %s31, 1
        %s429 = scalar_select %p428, %s31, 1
        %s430 = scalar_lea.vmem %s0, %s429
        %p431 = scmp.lt.s32.totalorder %s31, 1
        %s432 = scalar_select %p431, %s31, 1
        %p433 = scmp.lt.s32.totalorder %s32, 1
        %s434 = scalar_select %p433, %s32, 1
        %s435 = smul.addr %s432, 2
        %s436 = sadd.s32 %s434, %s435
        %s437 = smul.addr %s436, 4
        %s438 = scalar_lea.vmem %s1, %s437
        %p439 = scmp.lt.s32.totalorder %s31, 1
        %s440 = scalar_select %p439, %s31, 1
        %p441 = scmp.lt.s32.totalorder %s32, 1
        %s442 = scalar_select %p441, %s32, 1
        %s443 = smul.addr %s440, 2
        %s444 = sadd.s32 %s442, %s443
        %s445 = smul.addr %s444, 4
        %s446 = scalar_lea.vmem %s2, %s445
        %p447 = scmp.lt.s32.totalorder %s31, 1
        %s448 = scalar_select %p447, %s31, 1
        %s449 = smul.addr %s448, 2
        %s450 = scalar_lea.vmem %s3, %s449
        %p451 = scmp.lt.s32.totalorder %s31, 1
        %s452 = scalar_select %p451, %s31, 1
        %s453 = smul.addr %s452, 2
        %s454 = scalar_lea.vmem %s10, %s453
        %p456 = scmp.eq.s32.totalorder %s32, 0
        // Predicated region
        $region57: #{additive_attention_fwd.1} parent=55 // pred_check
          %p457 = pneg %p456
        $region58: #{additive_attention_fwd.1} parent=55 // pred_check_branch
          %459 = sbr.rel (%p457) target = $region60
        $region59: #{additive_attention_fwd.1} parent=55 // pred_region
          %vm460 = vcmask 0
          %461 = vst.msk [vmem:[#allocation2] sm:$0x1] %vm460, -inf
          %462 = vst.msk [vmem:[#allocation3] sm:$0x1] %vm460, 0.0
          %vm463 = vcmask 253952
          %464 = vst.msk [vmem:[#allocation4] sm:$0x1] %vm463, 0.0
          %v465 = vld [vmem:[%s430] sm:$0x1]
          %v466 = vld [vmem:[%s4] sm:$0xf]
          %v467 = vld [vmem:[%s4 + $0x4] sm:$0xf]
          %v468 = vld [vmem:[%s4 + $0x8] sm:$0xf]
          %v469 = vld [vmem:[%s4 + $0xc] sm:$0xf]
          %v470 = vld [vmem:[%s6] sm:$0x1]
          %v475 = vunpack.c.l.b16 %v466
          %v476 = vunpack.c.l.b16 %v467
          %v477 = vunpack.c.l.b16 %v468
          %v478 = vunpack.c.l.b16 %v469
          %v479 = vpack.c.b16 %v476, %v475
          %v480 = vpack.c.b16 %v478, %v477
          %vm483 = vcmask 261120
          %v485 = vsel %vm483, %v465, 0
          %487 = vmatprep.subr.bf16.mxu0 0
          %488 = vmatpush1.bf16.msra.mxu0 0
          %489 = vmatprep.subr.bf16.mxu0 0
          %490 = vmatpush1.bf16.msra.mxu0 0
          %491 = vmatprep.subr.bf16.mxu0 0
          %492 = vmatpush1.bf16.msra.mxu0 0
          %493 = vmatprep.subr.bf16.mxu0 0
          %494 = vmatpush1.bf16.msra.mxu0 0
          %495 = vmatprep.subr.bf16.mxu0 0
          %496 = vmatpush1.bf16.msra.mxu0 0
          %497 = vmatprep.subr.bf16.mxu0 0
          %498 = vmatpush1.bf16.msra.mxu0 0
          %499 = vmatprep.subr.bf16.mxu0 0
          %500 = vmatpush1.bf16.msra.mxu0 %v480
          %501 = vmatprep.subr.bf16.mxu0 0
          %502 = vmatpush1.bf16.msra.mxu0 %v479
          %503 = vmatprep.subr.bf16.mxu0 0
          %504 = vmatpush2.bf16.msra.mxu0 0
          %505 = vmatprep.subr.bf16.mxu0 0
          %506 = vmatpush2.bf16.msra.mxu0 0
          %507 = vmatprep.subr.bf16.mxu0 0
          %508 = vmatpush2.bf16.msra.mxu0 0
          %509 = vmatprep.subr.bf16.mxu0 0
          %510 = vmatpush2.bf16.msra.mxu0 0
          %511 = vmatprep.subr.bf16.mxu0 0
          %512 = vmatpush2.bf16.msra.mxu0 0
          %513 = vmatprep.subr.bf16.mxu0 0
          %514 = vmatpush2.bf16.msra.mxu0 0
          %515 = vmatprep.subr.bf16.mxu0 0
          %516 = vmatpush2.bf16.msra.mxu0 0
          %517 = vmatprep.subr.bf16.mxu0 0
          %518 = vmatpush2.bf16.msra.mxu0 0
          %519 = vmatprep.mubr.bf16.mxu0 0
          %520 = vmatmul.mubr.bf16.gmra.mxu0 %v485
          %v521 = vpop.f32.mrf.mxu0
          %v522 = vadd.f32 %v470, %v521
          %v523 = vpop.f32.mrf.mxu0
          %v524 = vpop.f32.mrf.mxu0
          %v525 = vpop.f32.mrf.mxu0
          %526 = vdwg.mxu0
          %527 = vst.msk [vmem:[#allocation5] sm:$0x1] %vm463, %v522
        $region60: #{additive_attention_fwd.1} parent=55 // pred_fallthru
          _
        %v528 = vld [vmem:[%s438] sm:$0xf]
        %v529 = vld [vmem:[%s5] sm:$0xf]
        %v530 = vld [vmem:[%s5 + $0x4] sm:$0xf]
        %v531 = vld [vmem:[%s5 + $0x8] sm:$0xf]
        %v532 = vld [vmem:[%s5 + $0xc] sm:$0xf]
        %v537 = vunpack.c.l.b16 %v529
        %v538 = vunpack.c.l.b16 %v530
        %v539 = vunpack.c.l.b16 %v531
        %v540 = vunpack.c.l.b16 %v532
        %v541 = vpack.c.b16 %v538, %v537
        %v542 = vpack.c.b16 %v540, %v539
        %vm545 = vcmask 261120
        %v547 = vsel %vm545, %v528, 0
        %549 = vmatprep.subr.bf16.mxu0 0
        %550 = vmatpush1.bf16.msra.mxu0 0
        %551 = vmatprep.subr.bf16.mxu0 0
        %552 = vmatpush1.bf16.msra.mxu0 0
        %553 = vmatprep.subr.bf16.mxu0 0
        %554 = vmatpush1.bf16.msra.mxu0 0
        %555 = vmatprep.subr.bf16.mxu0 0
        %556 = vmatpush1.bf16.msra.mxu0 0
        %557 = vmatprep.subr.bf16.mxu0 0
        %558 = vmatpush1.bf16.msra.mxu0 0
        %559 = vmatprep.subr.bf16.mxu0 0
        %560 = vmatpush1.bf16.msra.mxu0 0
        %561 = vmatprep.subr.bf16.mxu0 0
        %562 = vmatpush1.bf16.msra.mxu0 %v542
        %563 = vmatprep.subr.bf16.mxu0 0
        %564 = vmatpush1.bf16.msra.mxu0 %v541
        %565 = vmatprep.subr.bf16.mxu0 0
        %566 = vmatpush2.bf16.msra.mxu0 0
        %567 = vmatprep.subr.bf16.mxu0 0
        %568 = vmatpush2.bf16.msra.mxu0 0
        %569 = vmatprep.subr.bf16.mxu0 0
        %570 = vmatpush2.bf16.msra.mxu0 0
        %571 = vmatprep.subr.bf16.mxu0 0
        %572 = vmatpush2.bf16.msra.mxu0 0
        %573 = vmatprep.subr.bf16.mxu0 0
        %574 = vmatpush2.bf16.msra.mxu0 0
        %575 = vmatprep.subr.bf16.mxu0 0
        %576 = vmatpush2.bf16.msra.mxu0 0
        %577 = vmatprep.subr.bf16.mxu0 0
        %578 = vmatpush2.bf16.msra.mxu0 0
        %579 = vmatprep.subr.bf16.mxu0 0
        %580 = vmatpush2.bf16.msra.mxu0 0
        %581 = vmatprep.mubr.bf16.mxu0 0
        %582 = vmatmul.mubr.bf16.gmra.mxu0 %v547
        %v583 = vpop.f32.mrf.mxu0
        %v584 = vadd.f32 0.0, %v583
        %v585 = vpop.f32.mrf.mxu0
        %v586 = vpop.f32.mrf.mxu0
        %v587 = vpop.f32.mrf.mxu0
        %588 = vdwg.mxu0
        %v589 = vld [vmem:[#allocation5] sm:$0x1]
        %v591 = vlaneseq
        %v592 = vshrl.u32 %v591, 7
        %v593 = vsub.s32 0, %v592
        %v594 = vrot.slane %v589, %v593
        %v596 = vadd.f32 %v594, %v584
        %v597 = vtanh.pop %v596
        %v598 = vld [vmem:[%s7] sm:$0x1]
        %v599 = vld [vmem:[#allocation6] sm:$0x1]
        %601 = vset.pattern.permute.xlu0 0
        %602 = vperm.xlu0 %601, %v599
        %v603 = vpop.permute.xlu0 %602
        %v605 = vlaneseq
        %v606 = vshrl.u32 %v605, 7
        %v607 = vsub.s32 0, %v606
        %v608 = vrot.slane %v603, %v607
        %v610 = vsel %vm545, %v598, 0
        %v613 = vsel %vm545, %v597, 0
        %615 = vmatprep.subr.mxu0 0.0
        %616 = vmatpush1.xpose.msra.mxu0 0.0
        %617 = vmatprep.subr.mxu0 0.0
        %618 = vmatpush1.xpose.msra.mxu0 0.0
        %619 = vmatprep.subr.mxu0 0.0
        %620 = vmatpush1.xpose.msra.mxu0 0.0
        %621 = vmatprep.subr.mxu0 0.0
        %622 = vmatpush1.xpose.msra.mxu0 0.0
        %623 = vmatprep.subr.mxu0 0.0
        %624 = vmatpush1.xpose.msra.mxu0 0.0
        %625 = vmatprep.subr.mxu0 0.0
        %626 = vmatpush1.xpose.msra.mxu0 0.0
        %627 = vmatprep.subr.mxu0 0.0
        %628 = vmatpush1.xpose.msra.mxu0 0.0
        %629 = vmatprep.subr.mxu0 0.0
        %630 = vmatpush1.xpose.msra.mxu0 0.0
        %631 = vmatprep.subr.mxu0 0.0
        %632 = vmatpush1.xpose.msra.mxu0 0.0
        %633 = vmatprep.subr.mxu0 0.0
        %634 = vmatpush1.xpose.msra.mxu0 0.0
        %635 = vmatprep.subr.mxu0 0.0
        %636 = vmatpush1.xpose.msra.mxu0 0.0
        %637 = vmatprep.subr.mxu0 0.0
        %638 = vmatpush1.xpose.msra.mxu0 0.0
        %639 = vmatprep.subr.mxu0 0.0
        %640 = vmatpush1.xpose.msra.mxu0 0.0
        %641 = vmatprep.subr.mxu0 0.0
        %642 = vmatpush1.xpose.msra.mxu0 0.0
        %643 = vmatprep.subr.mxu0 0.0
        %644 = vmatpush1.xpose.msra.mxu0 0.0
        %645 = vmatprep.subr.mxu0 0.0
        %646 = vmatpush1.xpose.msra.mxu0 %v613
        %647 = vmatprep.subr.mxu0 0.0
        %648 = vmatpush2.xpose.msra.mxu0 0.0
        %649 = vmatprep.subr.mxu0 0.0
        %650 = vmatpush2.xpose.msra.mxu0 0.0
        %651 = vmatprep.subr.mxu0 0.0
        %652 = vmatpush2.xpose.msra.mxu0 0.0
        %653 = vmatprep.subr.mxu0 0.0
        %654 = vmatpush2.xpose.msra.mxu0 0.0
        %655 = vmatprep.subr.mxu0 0.0
        %656 = vmatpush2.xpose.msra.mxu0 0.0
        %657 = vmatprep.subr.mxu0 0.0
        %658 = vmatpush2.xpose.msra.mxu0 0.0
        %659 = vmatprep.subr.mxu0 0.0
        %660 = vmatpush2.xpose.msra.mxu0 0.0
        %661 = vmatprep.subr.mxu0 0.0
        %662 = vmatpush2.xpose.msra.mxu0 0.0
        %663 = vmatprep.subr.mxu0 0.0
        %664 = vmatpush2.xpose.msra.mxu0 0.0
        %665 = vmatprep.subr.mxu0 0.0
        %666 = vmatpush2.xpose.msra.mxu0 0.0
        %667 = vmatprep.subr.mxu0 0.0
        %668 = vmatpush2.xpose.msra.mxu0 0.0
        %669 = vmatprep.subr.mxu0 0.0
        %670 = vmatpush2.xpose.msra.mxu0 0.0
        %671 = vmatprep.subr.mxu0 0.0
        %672 = vmatpush2.xpose.msra.mxu0 0.0
        %673 = vmatprep.subr.mxu0 0.0
        %674 = vmatpush2.xpose.msra.mxu0 0.0
        %675 = vmatprep.subr.mxu0 0.0
        %676 = vmatpush2.xpose.msra.mxu0 0.0
        %677 = vmatprep.subr.mxu0 0.0
        %678 = vmatpush2.xpose.msra.mxu0 0.0
        %679 = vmatprep.mubr.f32.mxu0 0.0
        %680 = vmatmul.mubr.f32.gmra.mxu0 %v610
        %v681 = vpop.f32.mrf.mxu0
        %v682 = vadd.f32 %v608, %v681
        %v683 = vpop.f32.mrf.mxu0
        %684 = vdwg.mxu0
        %s685 = scalar_lea.vmem %s450, %s32
        %v686 = vld [vmem:[%s685] sm:$0x1]
        %vm687 = vcmp.gt.s32.totalorder %v686, 0
        %v688 = vsel %vm687, -inf, %v682
        %s689 = scalar_lea.vmem %s454, %s32
        %vm690 = vcmask 57344
        %691 = vst.msk [vmem:[%s689] sm:$0x1] %vm690, %v688
        %v692 = vld [vmem:[#allocation2] sm:$0x1]
        %v693 = vsel %vm690, %v688, -inf
        %694 = vmax.xlane.f32.xlu0 %v693
        %v695 = vpop.xlane.xlu0 %694
        %v696 = vmax.f32 %v692, %v695
        %vm697 = vcmp.eq.f32.partialorder %v692, -inf
        %v698 = vsub.f32 %v692, %v696
        %v699 = vmul.f32 %v698, 1.442695
        %v700 = vpow.pop %v699
        %v701 = vsel %vm697, 0.0, %v700
        %703 = vset.pattern.permute.xlu0 0
        %704 = vperm.xlu0 %703, %v696
        %v705 = vpop.permute.xlu0 %704
        %v707 = vlaneseq
        %v708 = vshrl.u32 %v707, 7
        %v709 = vsub.s32 0, %v708
        %v710 = vrot.slane %v705, %v709
        %v711 = vsub.f32 %v688, %v710
        %v712 = vmul.f32 %v711, 1.442695
        %v713 = vpow.pop %v712
        %v714 = vsel %vm687, 0.0, %v713
        %v715 = vld [vmem:[#allocation3] sm:$0x1]
        %v716 = vmul.f32 %v701, %v715
        %v717 = vsel %vm690, %v714, 0.0
        %718 = vadd.xlane.f32.xlu0 %v717
        %v719 = vpop.xlane.xlu0 %718
        %v720 = vadd.f32 %v716, %v719
        %vm721 = vcmask 0
        %722 = vst.msk [vmem:[#allocation3] sm:$0x1] %vm721, %v720
        %v723 = vld [vmem:[#allocation4] sm:$0x1]
        %725 = vset.pattern.permute.xlu0 0
        %726 = vperm.xlu0 %725, %v701
        %v727 = vpop.permute.xlu0 %726
        %v729 = vlaneseq
        %v730 = vshrl.u32 %v729, 7
        %v731 = vsub.s32 0, %v730
        %v732 = vrot.slane %v727, %v731
        %v733 = vmul.f32 %v732, %v723
        %v734 = vld [vmem:[%s446] sm:$0xf]
        %v735 = vunpack.c.l.bf16 %v734
        %vm736 = vcmask 64512
        %v738 = vsel %vm736, %v714, 0
        %740 = vmatprep.subr.mxu0 0.0
        %741 = vmatpush1.msra.mxu0 0.0
        %742 = vmatprep.subr.mxu0 0.0
        %743 = vmatpush1.msra.mxu0 0.0
        %744 = vmatprep.subr.mxu0 0.0
        %745 = vmatpush1.msra.mxu0 0.0
        %746 = vmatprep.subr.mxu0 0.0
        %747 = vmatpush1.msra.mxu0 0.0
        %748 = vmatprep.subr.mxu0 0.0
        %749 = vmatpush1.msra.mxu0 0.0
        %750 = vmatprep.subr.mxu0 0.0
        %751 = vmatpush1.msra.mxu0 0.0
        %752 = vmatprep.subr.mxu0 0.0
        %753 = vmatpush1.msra.mxu0 0.0
        %754 = vmatprep.subr.mxu0 0.0
        %755 = vmatpush1.msra.mxu0 0.0
        %756 = vmatprep.subr.mxu0 0.0
        %757 = vmatpush1.msra.mxu0 0.0
        %758 = vmatprep.subr.mxu0 0.0
        %759 = vmatpush1.msra.mxu0 0.0
        %760 = vmatprep.subr.mxu0 0.0
        %761 = vmatpush1.msra.mxu0 0.0
        %762 = vmatprep.subr.mxu0 0.0
        %763 = vmatpush1.msra.mxu0 0.0
        %764 = vmatprep.subr.mxu0 0.0
        %765 = vmatpush1.msra.mxu0 0.0
        %766 = vmatprep.subr.mxu0 0.0
        %767 = vmatpush1.msra.mxu0 0.0
        %768 = vmatprep.subr.mxu0 0.0
        %769 = vmatpush1.msra.mxu0 0.0
        %770 = vmatprep.subr.mxu0 0.0
        %771 = vmatpush1.msra.mxu0 %v735
        %772 = vmatprep.subr.mxu0 0.0
        %773 = vmatpush2.msra.mxu0 0.0
        %774 = vmatprep.subr.mxu0 0.0
        %775 = vmatpush2.msra.mxu0 0.0
        %776 = vmatprep.subr.mxu0 0.0
        %777 = vmatpush2.msra.mxu0 0.0
        %778 = vmatprep.subr.mxu0 0.0
        %779 = vmatpush2.msra.mxu0 0.0
        %780 = vmatprep.subr.mxu0 0.0
        %781 = vmatpush2.msra.mxu0 0.0
        %782 = vmatprep.subr.mxu0 0.0
        %783 = vmatpush2.msra.mxu0 0.0
        %784 = vmatprep.subr.mxu0 0.0
        %785 = vmatpush2.msra.mxu0 0.0
        %786 = vmatprep.subr.mxu0 0.0
        %787 = vmatpush2.msra.mxu0 0.0
        %788 = vmatprep.subr.mxu0 0.0
        %789 = vmatpush2.msra.mxu0 0.0
        %790 = vmatprep.subr.mxu0 0.0
        %791 = vmatpush2.msra.mxu0 0.0
        %792 = vmatprep.subr.mxu0 0.0
        %793 = vmatpush2.msra.mxu0 0.0
        %794 = vmatprep.subr.mxu0 0.0
        %795 = vmatpush2.msra.mxu0 0.0
        %796 = vmatprep.subr.mxu0 0.0
        %797 = vmatpush2.msra.mxu0 0.0
        %798 = vmatprep.subr.mxu0 0.0
        %799 = vmatpush2.msra.mxu0 0.0
        %800 = vmatprep.subr.mxu0 0.0
        %801 = vmatpush2.msra.mxu0 0.0
        %802 = vmatprep.subr.mxu0 0.0
        %803 = vmatpush2.msra.mxu0 0.0
        %804 = vmatprep.mubr.f32.mxu0 0.0
        %805 = vmatmul.mubr.f32.gmra.mxu0 %v738
        %v806 = vpop.f32.mrf.mxu0
        %v807 = vadd.f32 0.0, %v806
        %v808 = vpop.f32.mrf.mxu0
        %809 = vdwg.mxu0
        %v810 = vadd.f32 %v733, %v807
        %vm811 = vcmask 253952
        %812 = vst.msk [vmem:[#allocation4] sm:$0x1] %vm811, %v810
        %813 = vst.msk [vmem:[#allocation2] sm:$0x1] %vm721, %v696
        %p814 = scmp.eq.s32.totalorder %s32, 1
        // Predicated region
        $region61: #{additive_attention_fwd.1} parent=55 // pred_check
          %p815 = pneg %p814
        $region62: #{additive_attention_fwd.1} parent=55 // pred_check_branch
          %817 = sbr.rel (%p815) target = $region64
        $region63: #{additive_attention_fwd.1} parent=55 // pred_region
          %v818 = vld [vmem:[#allocation3] sm:$0x1]
          %v819 = vrcp.pop %v818
          %v820 = vmul.f32 1.0, %v819
          %v821 = vld [vmem:[%s454] sm:$0x3]
          %v822 = vld [vmem:[#allocation2] sm:$0x1]
          %v824 = vlaneseq
          %v825 = vshrl.u32 %v824, 7
          %v826 = vsub.s32 0, %v825
          %v827 = vrot.slane %v822, %v826
          %828 = vset.pattern.permute.xlu0 0
          %829 = vperm.xlu0 %828, %v827
          %v830 = vpop.permute.xlu0 %829
          %v832 = vsub.f32 %v821, %v830
          %v833 = vmul.f32 %v832, 1.442695
          %v834 = vpow.pop %v833
          %v836 = vlaneseq
          %v837 = vshrl.u32 %v836, 7
          %v838 = vsub.s32 0, %v837
          %v839 = vrot.slane %v820, %v838
          %840 = vset.pattern.permute.xlu0 0
          %841 = vperm.xlu0 %840, %v839
          %v842 = vpop.permute.xlu0 %841
          %v844 = vmul.f32 %v834, %v842
          %vm845 = vcmask 58368
          %846 = vst.msk [vmem:[%s454] sm:$0x3] %vm845, %v844
          %v847 = vld [vmem:[#allocation4] sm:$0x1]
          %848 = vset.pattern.permute.xlu0 0
          %849 = vperm.xlu0 %848, %v820
          %v850 = vpop.permute.xlu0 %849
          %v852 = vlaneseq
          %v853 = vshrl.u32 %v852, 7
          %v854 = vsub.s32 0, %v853
          %v855 = vrot.slane %v850, %v854
          %v856 = vmul.f32 %v847, %v855
          %857 = vst.msk [vmem:[%s421] sm:$0x1] %vm811, %v856
        $region64: #{additive_attention_fwd.1} parent=55 // pred_fallthru
          _
        %s858 = sand.u32 %s260, 1
        %s859 = scalar_lea.sflag [#allocation8], %s858
        %s860 = sand.u32 %s260, 1
        %s861 = scalar_lea.vmem [#allocation7], %s860
        %p862 = scmp.lt.s32.totalorder %s31, 1
        %s863 = scalar_select %p862, %s31, 1
        %s864 = smul.addr %s863, 2
        %s865 = scalar_lea.vmem %s10, %s864
        // Predicated region
        $region65: #{additive_attention_fwd.1} parent=55 // pred_check
          %p866 = pneg %p270
        $region66: #{additive_attention_fwd.1} parent=55 // pred_check_branch
          %868 = sbr.rel (%p866) target = $region68
        $region67: #{additive_attention_fwd.1} parent=55 // pred_region
          %s870 = ssub.s32 16, 16
          %871 = vsyncadd %s859, %s870
          %s872 = smul.addr %s31, 16
          %s873 = scalar_lea.hbm %s9, %s872
          %s875 = sshll.u32 %s861, 4
          %s876 = int_to_ptr.vmem [resolvable:$true] %s875
          %878 = dma.vmem_to_hbm [thread:$0]  %s876, 16, %s873, %s859
        $region68: #{additive_attention_fwd.1} parent=55 // pred_fallthru
          _
        // Predicated region
        $region69: #{additive_attention_fwd.1} parent=55 // pred_check
          %p879 = pneg %p296
        $region70: #{additive_attention_fwd.1} parent=55 // pred_check_branch
          %881 = sbr.rel (%p879) target = $region72
        $region71: #{additive_attention_fwd.1} parent=55 // pred_region
          _
        $region72: #{additive_attention_fwd.1} parent=55 // pred_fallthru
          _
      $region56: #{additive_attention_fwd.1} parent=5 // pred_fallthru
        _
      %p882 = scmp.le.s32.totalorder 2, %s22
      // Predicated region
      $region73: #{additive_attention_fwd.1} parent=5 // pred_check
        %p883 = pneg %p882
      $region74: #{additive_attention_fwd.1} parent=5 // pred_check_branch
        %885 = sbr.rel (%p883) target = $region76
      $region75: #{additive_attention_fwd.1} parent=5 // pred_region
        %s886 = ssub.s32 %s22, 2
        // Predicated region
        $region77: #{additive_attention_fwd.1} parent=75 // pred_check
          %p887 = pneg %p276
        $region78: #{additive_attention_fwd.1} parent=75 // pred_check_branch
          %889 = sbr.rel (%p887) target = $region80
        $region79: #{additive_attention_fwd.1} parent=75 // pred_region
          %s890 = sand.u32 %s261, 1
          %s891 = scalar_lea.sflag [#allocation8], %s890
          %s892 = sand.u32 %s261, 1
          %s893 = scalar_lea.vmem [#allocation7], %s892
          %894 = dma.done %s891, 16
        $region80: #{additive_attention_fwd.1} parent=75 // pred_fallthru
          _
        // Predicated region
        $region81: #{additive_attention_fwd.1} parent=75 // pred_check
          %p895 = pneg %p302
        $region82: #{additive_attention_fwd.1} parent=75 // pred_check_branch
          %897 = sbr.rel (%p895) target = $region84
        $region83: #{additive_attention_fwd.1} parent=75 // pred_region
          %p898 = scmp.lt.s32.totalorder %s33, 1
          %s899 = scalar_select %p898, %s33, 1
          %s900 = smul.addr %s899, 2
          %s901 = scalar_lea.vmem %s10, %s900
        $region84: #{additive_attention_fwd.1} parent=75 // pred_fallthru
          _
      $region76: #{additive_attention_fwd.1} parent=5 // pred_fallthru
        _
    $region6: #{additive_attention_fwd.1} parent=1 // loop_footer
      %s26 = sadd.s32 1, %s22
    $region7: #{additive_attention_fwd.1} parent=1 // loop_footer_branch
      %21 = sbr.rel target = $region3
    $region8: #{additive_attention_fwd.1} parent=1 // loop_exit
      _
    %902 = vsyncpa [#allocation8], 1
    %s903 = scalar_lea.sflag [#allocation8], 1
    %904 = vsyncpa %s903, 1

</llo_original>
